<compile_context>
chip_gen: v5e
topology: v5e:2x2
jax: 0.10.0
libtpu: 0.0.40
codegen_flags: <defaults>
</compile_context>

<pallas_src>
import functools

import jax
import jax.numpy as jnp
import numpy as np
from jax import lax
from jax.experimental import pallas as pl
from jax.experimental.pallas import tpu as pltpu


def _round_up(x, m):
    return ((x + m - 1) // m) * m


# --------------------------------------------------------------------------
# Pass 1: per-channel sum / sum-of-squares of the linear output (BN stats).
# Grid axis is a reduction ("arbitrary"); outputs stay resident (constant
# block index) and act as accumulators.
# --------------------------------------------------------------------------
def _pfn_stats_kernel(x_ref, w_ref, sum_ref, sumsq_ref):
    @pl.when(pl.program_id(0) == 0)
    def _init():
        sum_ref[...] = jnp.zeros_like(sum_ref)
        sumsq_ref[...] = jnp.zeros_like(sumsq_ref)

    # (TN*P, Cin) @ (Cin, Ch) on the MXU, f32 accumulation.
    y = jnp.dot(x_ref[...], w_ref[...], preferred_element_type=jnp.float32)
    sum_ref[...] += jnp.sum(y, axis=0, keepdims=True)
    sumsq_ref[...] += jnp.sum(y * y, axis=0, keepdims=True)


# --------------------------------------------------------------------------
# Pass 2: linear + folded scale/shift (+ bias or BN affine) + ReLU +
# per-pillar max.  Independent over pillar tiles -> "parallel".
# --------------------------------------------------------------------------
def _pfn_main_kernel(x_ref, w_ref, scale_ref, shift_ref, *out_refs,
                     n_tile, p_points, last_layer):
    y = jnp.dot(x_ref[...], w_ref[...], preferred_element_type=jnp.float32)
    # Fused normalize+affine (or bias) and ReLU: one FMA-shaped op + max.
    y = jnp.maximum(y * scale_ref[...] + shift_ref[...], 0.0)   # (TN*P, Ch)

    ch = y.shape[-1]
    # Leading-dim split only; P % 8 == 0 keeps this layout-preserving.
    y3 = y.reshape(n_tile, p_points, ch)

    if last_layer:
        (ymax_ref,) = out_refs
    else:
        y_out_ref, ymax_ref = out_refs
        y_out_ref[...] = y.astype(y_out_ref.dtype)

    ymax_ref[...] = jnp.max(y3, axis=1).astype(ymax_ref.dtype)  # (TN, Ch)


def pfn_layer_forward(x, w, gamma, beta, *, eps=1e-3, use_norm=True,
                      last_layer=False, tile_n=512):
    """x: (N, P, Cin); w: (Cin, Ch) = linear.weight.T; gamma/beta: (1, Ch).

    When use_norm=False, `beta` carries the linear bias and `gamma` is unused.
    `tile_n` pillars per grid step (512 is safe for v5e/v6e/v7x VMEM budgets).
    """
    N, P, Cin = x.shape
    Ch = w.shape[1]

    # Tile over pillars; keep the tile a multiple of 8 (sublane) and pad N.
    tn = max(8, min(int(tile_n), _round_up(N, 8)))
    tn = _round_up(tn, 8)
    n_pad = _round_up(N, tn)
    num_tiles = n_pad // tn

    if n_pad != N:
        # Zero pillars contribute exactly 0 to the BN sums (no bias before BN)
        # and are sliced away from the outputs below.
        x = jnp.pad(x, ((0, n_pad - N), (0, 0), (0, 0)))

    # Flatten the pillar/point axes in the wrapper (free layout plumbing).
    x2 = x.reshape(n_pad * P, Cin)

    w = w.astype(jnp.float32)
    gamma = gamma.astype(jnp.float32)
    beta = beta.astype(jnp.float32)

    compiler_params_red = pltpu.CompilerParams(
        dimension_semantics=("arbitrary",), vmem_limit_bytes=32 * 1024 * 1024)
    compiler_params_par = pltpu.CompilerParams(
        dimension_semantics=("parallel",), vmem_limit_bytes=32 * 1024 * 1024)

    mm_flops = 2 * n_pad * P * Cin * Ch

    if use_norm:
        # ---- Pass 1: global BN statistics (training-mode semantics). ----
        s, ss = pl.pallas_call(
            _pfn_stats_kernel,
            grid=(num_tiles,),
            in_specs=[
                pl.BlockSpec((tn * P, Cin), lambda i: (i, 0)),
                pl.BlockSpec((Cin, Ch), lambda i: (0, 0)),
            ],
            out_specs=(
                pl.BlockSpec((1, Ch), lambda i: (0, 0)),
                pl.BlockSpec((1, Ch), lambda i: (0, 0)),
            ),
            out_shape=(
                jax.ShapeDtypeStruct((1, Ch), jnp.float32),
                jax.ShapeDtypeStruct((1, Ch), jnp.float32),
            ),
            compiler_params=compiler_params_red,
            cost_estimate=pl.CostEstimate(
                flops=mm_flops + 3 * n_pad * P * Ch,
                transcendentals=0,
                bytes_accessed=4 * (n_pad * P * Cin + Cin * Ch + 2 * Ch)),
        )(x2, w)

        count = jnp.float32(N * P)           # true count (exclude padding)
        mean = s / count                     # (1, Ch)
        var = ss / count - mean * mean       # biased variance (training BN)
        scale = gamma * lax.rsqrt(var + eps)
        shift = beta - mean * scale
    else:
        # Plain linear-with-bias path.
        scale = jnp.ones((1, Ch), dtype=jnp.float32)
        shift = beta

    # ---- Pass 2: linear + scale/shift + ReLU + per-pillar max. ----
    kernel = functools.partial(_pfn_main_kernel, n_tile=tn, p_points=P,
                               last_layer=last_layer)

    in_specs = [
        pl.BlockSpec((tn * P, Cin), lambda i: (i, 0)),
        pl.BlockSpec((Cin, Ch), lambda i: (0, 0)),
        pl.BlockSpec((1, Ch), lambda i: (0, 0)),
        pl.BlockSpec((1, Ch), lambda i: (0, 0)),
    ]

    out_bytes = 4 * n_pad * Ch + (0 if last_layer else 4 * n_pad * P * Ch)
    cost = pl.CostEstimate(
        flops=mm_flops + 5 * n_pad * P * Ch,
        transcendentals=0,
        bytes_accessed=4 * (n_pad * P * Cin + Cin * Ch + 2 * Ch) + out_bytes)

    if last_layer:
        ymax = pl.pallas_call(
            kernel,
            grid=(num_tiles,),
            in_specs=in_specs,
            out_specs=pl.BlockSpec((tn, Ch), lambda i: (i, 0)),
            out_shape=jax.ShapeDtypeStruct((n_pad, Ch), jnp.float32),
            compiler_params=compiler_params_par,
            cost_estimate=cost,
        )(x2, w, scale, shift)
        return ymax[:N].reshape(N, 1, Ch)

    y_out, ymax = pl.pallas_call(
        kernel,
        grid=(num_tiles,),
        in_specs=in_specs,
        out_specs=(
            pl.BlockSpec((tn * P, Ch), lambda i: (i, 0)),
            pl.BlockSpec((tn, Ch), lambda i: (i, 0)),
        ),
        out_shape=(
            jax.ShapeDtypeStruct((n_pad * P, Ch), jnp.float32),
            jax.ShapeDtypeStruct((n_pad, Ch), jnp.float32),
        ),
        compiler_params=compiler_params_par,
        cost_estimate=cost,
    )(x2, w, scale, shift)

    # Wrapper-side slice / reshape / concat (XLA): avoids in-kernel lane
    # interleaving of the 2*Ch=64-wide concatenated output.
    y = y_out[:N * P].reshape(N, P, Ch)
    ymax = ymax[:N]
    return jnp.concatenate(
        [y, jnp.broadcast_to(ymax[:, None, :], (N, P, Ch))], axis=-1)


# --------------------------------------------------------------------------
# NumPy reference (torch semantics: two-pass biased BN, training mode).
# --------------------------------------------------------------------------
def _reference(x, w, gamma, beta, eps, use_norm, last_layer):
    N, P, Cin = x.shape
    Ch = w.shape[1]
    y = x.reshape(N * P, Cin) @ w
    if use_norm:
        mean = y.mean(axis=0, keepdims=True)
        var = ((y - mean) ** 2).mean(axis=0, keepdims=True)
        y = (y - mean) / np.sqrt(var + eps) * gamma + beta
    else:
        y = y + beta
    y = np.maximum(y, 0.0).reshape(N, P, Ch)
    y_max = y.max(axis=1, keepdims=True)
    if last_layer:
        return y_max
    return np.concatenate([y, np.broadcast_to(y_max, (N, P, Ch))], axis=2)


if __name__ == "__main__":
    key = jax.random.PRNGKey(0)
    k_x1, k_w1, k_x2, k_w2 = jax.random.split(key, 4)

    P = 32  # points per pillar (PointPillars convention)

    # --- Config 1: PFNLayer(10, 64, use_norm=True, last_layer=False) ---
    in_ch, out_ch = 10, 64
    c_half = out_ch // 2  # 32
    N1 = 50               # not a multiple of the tile -> exercises padding
    x1 = jax.random.normal(k_x1, (N1, P, in_ch), dtype=jnp.float32)
    bound = 1.0 / np.sqrt(in_ch)
    w1 = jax.random.uniform(k_w1, (in_ch, c_half), dtype=jnp.float32,
                            minval=-bound, maxval=bound)
    g1 = jnp.ones((1, c_half), dtype=jnp.float32)
    b1 = jnp.zeros((1, c_half), dtype=jnp.float32)

    out1 = pfn_layer_forward(x1, w1, g1, b1, eps=1e-3, use_norm=True,
                             last_layer=False, tile_n=16)
    out1 = jax.block_until_ready(out1)
    ref1 = _reference(np.asarray(x1), np.asarray(w1), np.asarray(g1),
                      np.asarray(b1), 1e-3, True, False)
    np.testing.assert_allclose(np.asarray(out1), ref1, rtol=2e-4, atol=2e-4)

    # --- Config 2: PFNLayer(32, 64, use_norm=True, last_layer=True) ---
    in_ch2, out_ch2 = 32, 64
    N2 = 40
    x2 = jax.random.normal(k_x2, (N2, P, in_ch2), dtype=jnp.float32)
    bound2 = 1.0 / np.sqrt(in_ch2)
    w2 = jax.random.uniform(k_w2, (in_ch2, out_ch2), dtype=jnp.float32,
                            minval=-bound2, maxval=bound2)
    g2 = jnp.ones((1, out_ch2), dtype=jnp.float32)
    b2 = jnp.zeros((1, out_ch2), dtype=jnp.float32)

    out2 = pfn_layer_forward(x2, w2, g2, b2, eps=1e-3, use_norm=True,
                             last_layer=True, tile_n=16)
    out2 = jax.block_until_ready(out2)
    ref2 = _reference(np.asarray(x2), np.asarray(w2), np.asarray(g2),
                      np.asarray(b2), 1e-3, True, True)
    np.testing.assert_allclose(np.asarray(out2), ref2, rtol=2e-4, atol=2e-4)

    print("KERNEL_OK")
</pallas_src>

<mosaic_0001>
module attributes {stable_mosaic.version = 11 : i64} {
  func.func @_pfn_stats_kernel(%arg0: i32, %arg1: memref<512x10xf32, #tpu.memory_space<vmem>>, %arg2: memref<10x32xf32, #tpu.memory_space<vmem>>, %arg3: memref<1x32xf32, #tpu.memory_space<vmem>>, %arg4: memref<1x32xf32, #tpu.memory_space<vmem>>) attributes {dimension_semantics = [#tpu.dimension_semantics<arbitrary>], iteration_bounds = array<i64: 4>, scalar_prefetch = 0 : i64, scratch_operands = 0 : i64, tpu.core_type = #tpu.core_type<tc>, window_params = [{transform_indices = @transform_0, window_bounds = array<i64: 512, 10>}, {pipeline_mode = #tpu.pipeline_mode<synchronous>, transform_indices = @transform_1, window_bounds = array<i64: 10, 32>}, {pipeline_mode = #tpu.pipeline_mode<synchronous>, transform_indices = @transform_2, window_bounds = array<i64: 1, 32>}, {pipeline_mode = #tpu.pipeline_mode<synchronous>, transform_indices = @transform_3, window_bounds = array<i64: 1, 32>}]} {
    %c0_i32 = arith.constant 0 : i32
    %0 = arith.cmpi eq, %arg0, %c0_i32 : i32
    %1 = arith.extui %0 : i1 to i32
    %c0_i32_0 = arith.constant 0 : i32
    %2 = arith.cmpi ne, %1, %c0_i32_0 : i32
    scf.if %2 {
      %cst_14 = arith.constant 0.000000e+00 : f32
      %17 = vector.broadcast %cst_14 : f32 to vector<1x32xf32>
      %c0_15 = arith.constant 0 : index
      %c0_16 = arith.constant 0 : index
      %18 = vector.load %arg3[%c0_15, %c0_16] : memref<1x32xf32, #tpu.memory_space<vmem>>, vector<1x32xf32>
      tpu.vector_store %arg3[%c0_15, %c0_16], %17 {strides = array<i32>} : memref<1x32xf32, #tpu.memory_space<vmem>>, vector<1x32xf32>,
      %cst_17 = arith.constant 0.000000e+00 : f32
      %19 = vector.broadcast %cst_17 : f32 to vector<1x32xf32>
      %c0_18 = arith.constant 0 : index
      %c0_19 = arith.constant 0 : index
      %20 = vector.load %arg4[%c0_18, %c0_19] : memref<1x32xf32, #tpu.memory_space<vmem>>, vector<1x32xf32>
      tpu.vector_store %arg4[%c0_18, %c0_19], %19 {strides = array<i32>} : memref<1x32xf32, #tpu.memory_space<vmem>>, vector<1x32xf32>,
    } else {
    }
    %c0 = arith.constant 0 : index
    %c0_1 = arith.constant 0 : index
    %3 = vector.load %arg1[%c0, %c0_1] : memref<512x10xf32, #tpu.memory_space<vmem>>, vector<512x10xf32>
    %c0_2 = arith.constant 0 : index
    %c0_3 = arith.constant 0 : index
    %4 = vector.load %arg2[%c0_2, %c0_3] : memref<10x32xf32, #tpu.memory_space<vmem>>, vector<10x32xf32>
    %cst = arith.constant dense<0.000000e+00> : vector<512x32xf32>
    %5 = tpu.matmul %3, %4, %cst {dimension_numbers = #tpu.dot_dimension_numbers<[1], [0], [0], [1], [0, 0, 1, 1], [], []>} : vector<512x10xf32>, vector<10x32xf32>, vector<512x32xf32> -> vector<512x32xf32>
    %c0_4 = arith.constant 0 : index
    %c0_5 = arith.constant 0 : index
    %6 = vector.load %arg3[%c0_4, %c0_5] : memref<1x32xf32, #tpu.memory_space<vmem>>, vector<1x32xf32>
    %cst_6 = arith.constant dense<0.000000e+00> : vector<32xf32>
    %7 = vector.multi_reduction <add>, %5, %cst_6 [0] : vector<512x32xf32> to vector<32xf32>
    %8 = vector.shape_cast %7 : vector<32xf32> to vector<1x32xf32>
    %9 = arith.addf %6, %8 : vector<1x32xf32>
    %c0_7 = arith.constant 0 : index
    %c0_8 = arith.constant 0 : index
    %10 = vector.load %arg3[%c0_7, %c0_8] : memref<1x32xf32, #tpu.memory_space<vmem>>, vector<1x32xf32>
    tpu.vector_store %arg3[%c0_7, %c0_8], %9 {strides = array<i32>} : memref<1x32xf32, #tpu.memory_space<vmem>>, vector<1x32xf32>,
    %c0_9 = arith.constant 0 : index
    %c0_10 = arith.constant 0 : index
    %11 = vector.load %arg4[%c0_9, %c0_10] : memref<1x32xf32, #tpu.memory_space<vmem>>, vector<1x32xf32>
    %12 = arith.mulf %5, %5 : vector<512x32xf32>
    %cst_11 = arith.constant dense<0.000000e+00> : vector<32xf32>
    %13 = vector.multi_reduction <add>, %12, %cst_11 [0] : vector<512x32xf32> to vector<32xf32>
    %14 = vector.shape_cast %13 : vector<32xf32> to vector<1x32xf32>
    %15 = arith.addf %11, %14 : vector<1x32xf32>
    %c0_12 = arith.constant 0 : index
    %c0_13 = arith.constant 0 : index
    %16 = vector.load %arg4[%c0_12, %c0_13] : memref<1x32xf32, #tpu.memory_space<vmem>>, vector<1x32xf32>
    tpu.vector_store %arg4[%c0_12, %c0_13], %15 {strides = array<i32>} : memref<1x32xf32, #tpu.memory_space<vmem>>, vector<1x32xf32>,
    return
  }
  func.func @transform_0(%arg0: i32) -> (i32, i32) {
    %c0_i32 = arith.constant 0 : i32
    %c0_i32_0 = arith.constant 0 : i32
    return %arg0, %c0_i32 : i32, i32
  }
  func.func @transform_1(%arg0: i32) -> (i32, i32) {
    %c0_i32 = arith.constant 0 : i32
    %c0_i32_0 = arith.constant 0 : i32
    %c0_i32_1 = arith.constant 0 : i32
    return %c0_i32, %c0_i32_0 : i32, i32
  }
  func.func @transform_2(%arg0: i32) -> (i32, i32) {
    %c0_i32 = arith.constant 0 : i32
    %c0_i32_0 = arith.constant 0 : i32
    %c0_i32_1 = arith.constant 0 : i32
    return %c0_i32, %c0_i32_0 : i32, i32
  }
  func.func @transform_3(%arg0: i32) -> (i32, i32) {
    %c0_i32 = arith.constant 0 : i32
    %c0_i32_0 = arith.constant 0 : i32
    %c0_i32_1 = arith.constant 0 : i32
    return %c0_i32, %c0_i32_0 : i32, i32
  }
}

</mosaic_0001>

<llo_original>
// kernel: tpu_custom_call.1
$region0: #{tpu_custom_call.1}
  #allocation0 [shape = 'u32[]', space=smem, size = 0x4, offset = 0x4, fixed_abs, tag = 'smem constant byte address 0x4 - core index']
  #allocation1 [shape = 'u32[72,128]{1,0:T(1,128)}', space=vmem, size = 0x9000, scoped, tag = 'internal scratch']
  %s0 = inlined_call_operand.vmem [shape: f32[2048,10], index: 0, kind: input, shape index: {}]
  %s1 = inlined_call_operand.vmem [shape: f32[10,32], index: 1, kind: input, shape index: {}]
  %s2 = inlined_call_operand.hbm [shape: f32[1,32], index: 2, kind: output, shape index: {0}]
  %s3 = inlined_call_operand.hbm [shape: f32[1,32], index: 3, kind: output, shape index: {1}]
  %4 = xla_tuple %s2, %s3
  %s5 = sld [smem:[#allocation0]]
  $region53: #{tpu_custom_call.1} parent=0
    _
  %s7 = ssub.s32 1, %s5
  %s8 = scalar_select 0, %s7, %s5
  $region1: #{tpu_custom_call.1} parent=0
    #allocation2 [shape = 'u8[512]{0}', space=vmem, size = 0x400, scoped, tag = 'output window, operand 0, single buffered']
    #allocation3 [shape = 's32[2]{0}', space=sflag, size = 0x8, scoped, tag = 'scoped memory for tpu_custom_call.1']
    #allocation4 [shape = 'u8[512]{0}', space=vmem, size = 0x400, scoped, tag = 'output window, operand 1, single buffered']
    #allocation5 [shape = 's32[1]{0}', space=sflag, size = 0x4, scoped, tag = 'scoped memory for tpu_custom_call.1']
    %9 = vsyncpa [#allocation3], 0
    %10 = vsyncpa [#allocation5], 0
    loop: start=0, step=1, limit=6
    $region2: #{tpu_custom_call.1} parent=1 // loop_pre_header
      _
    $region3: #{tpu_custom_call.1} parent=1 // loop_header
      %s12 = sphi 0, %s16
      %p13 = scmp.ge.s32.totalorder %s12, 6
      %s22 = sphi 0, %s24
      %s25 = sphi 0, %s22
      %s26 = sphi 0, %s25
      %s42 = sphi 0, %s26
      %s46 = sphi 0, %s46
      %s48 = sphi 0, %s46
      %s49 = sphi 0, %s48
      %s63 = sphi 0, %s49
      %s67 = sphi 0, %s67
      %s69 = sphi 0, %s67
      %s70 = sphi 0, %s69
      %s84 = sphi 0, %s70
      %s88 = sphi 0, %s88
      %s90 = sphi 0, %s88
      %s91 = sphi 0, %s90
      %s105 = sphi 0, %s91
    $region4: #{tpu_custom_call.1} parent=1 // loop_header_branch
      %15 = sbr.rel (%p13) target = $region8
    $region5: #{tpu_custom_call.1} parent=1 // loop_body
      %s17 = ssub.s32 %s12, 1
      %s18 = ssub.s32 %s12, 2
      %s19 = sadd.s32 %s12, 1
      %s20 = ssub.s32 %s12, %s19
      %p21 = scmp.eq.s32.totalorder %s20, 0
      %s23 = sadd.s32 %s22, 1
      %s24 = scalar_select %p21, %s22, %s23
      %p27 = pneg %p21
      %p28 = scmp.eq.s32.totalorder %s12, 3
      %p29 = por %p27, %p28
      %p30 = scmp.ne.s32.totalorder %s22, %s25
      %p31 = scmp.eq.s32.totalorder %s12, 0
      %p32 = por %p30, %p31
      %p33 = scmp.ne.s32.totalorder %s22, %s25
      %p34 = scmp.eq.s32.totalorder %s17, 3
      %p35 = por %p33, %p34
      %p36 = scmp.ne.s32.totalorder %s25, %s26
      %p37 = scmp.eq.s32.totalorder %s17, 0
      %p38 = por %p36, %p37
      %p39 = scmp.ne.s32.totalorder %s25, %s26
      %p40 = scmp.eq.s32.totalorder %s18, 3
      %p41 = por %p39, %p40
      %p43 = scmp.ne.s32.totalorder %s26, %s42
      %p44 = scmp.eq.s32.totalorder %s18, 0
      %p45 = por %p43, %p44
      %s47 = sadd.s32 %s46, 1
      %p50 = scmp.eq.s32.totalorder %s12, 3
      %p51 = scmp.ne.s32.totalorder %s46, %s48
      %p52 = scmp.eq.s32.totalorder %s12, 0
      %p53 = por %p51, %p52
      %p54 = scmp.ne.s32.totalorder %s46, %s48
      %p55 = scmp.eq.s32.totalorder %s17, 3
      %p56 = por %p54, %p55
      %p57 = scmp.ne.s32.totalorder %s48, %s49
      %p58 = scmp.eq.s32.totalorder %s17, 0
      %p59 = por %p57, %p58
      %p60 = scmp.ne.s32.totalorder %s48, %s49
      %p61 = scmp.eq.s32.totalorder %s18, 3
      %p62 = por %p60, %p61
      %p64 = scmp.ne.s32.totalorder %s49, %s63
      %p65 = scmp.eq.s32.totalorder %s18, 0
      %p66 = por %p64, %p65
      %s68 = sadd.s32 %s67, 1
      %p71 = scmp.eq.s32.totalorder %s12, 3
      %p72 = scmp.ne.s32.totalorder %s67, %s69
      %p73 = scmp.eq.s32.totalorder %s12, 0
      %p74 = por %p72, %p73
      %p75 = scmp.ne.s32.totalorder %s67, %s69
      %p76 = scmp.eq.s32.totalorder %s17, 3
      %p77 = por %p75, %p76
      %p78 = scmp.ne.s32.totalorder %s69, %s70
      %p79 = scmp.eq.s32.totalorder %s17, 0
      %p80 = por %p78, %p79
      %p81 = scmp.ne.s32.totalorder %s69, %s70
      %p82 = scmp.eq.s32.totalorder %s18, 3
      %p83 = por %p81, %p82
      %p85 = scmp.ne.s32.totalorder %s70, %s84
      %p86 = scmp.eq.s32.totalorder %s18, 0
      %p87 = por %p85, %p86
      %s89 = sadd.s32 %s88, 1
      %p92 = scmp.eq.s32.totalorder %s12, 3
      %p93 = scmp.ne.s32.totalorder %s88, %s90
      %p94 = scmp.eq.s32.totalorder %s12, 0
      %p95 = por %p93, %p94
      %p96 = scmp.ne.s32.totalorder %s88, %s90
      %p97 = scmp.eq.s32.totalorder %s17, 3
      %p98 = por %p96, %p97
      %p99 = scmp.ne.s32.totalorder %s90, %s91
      %p100 = scmp.eq.s32.totalorder %s17, 0
      %p101 = por %p99, %p100
      %p102 = scmp.ne.s32.totalorder %s90, %s91
      %p103 = scmp.eq.s32.totalorder %s18, 3
      %p104 = por %p102, %p103
      %p106 = scmp.ne.s32.totalorder %s91, %s105
      %p107 = scmp.eq.s32.totalorder %s18, 0
      %p108 = por %p106, %p107
      %p109 = scmp.le.s32.totalorder 1, %s12
      %p110 = scmp.lt.s32.totalorder %s12, 5
      %p111 = pnand %p109, %p110
      %p112 = pneg %p111
      // Predicated region
      $region9: #{tpu_custom_call.1} parent=5 // pred_check
        _
      $region10: #{tpu_custom_call.1} parent=5 // pred_check_branch
        %114 = sbr.rel (%p111) target = $region12
      $region11: #{tpu_custom_call.1} parent=5 // pred_region
        %s115 = ssub.s32 %s12, 1
        // Predicated region
        $region13: #{tpu_custom_call.1} parent=11 // pred_check
          %p116 = pneg %p59
        $region14: #{tpu_custom_call.1} parent=11 // pred_check_branch
          %118 = sbr.rel (%p116) target = $region16
        $region15: #{tpu_custom_call.1} parent=11 // pred_region
          _
        $region16: #{tpu_custom_call.1} parent=11 // pred_fallthru
          _
      $region12: #{tpu_custom_call.1} parent=5 // pred_fallthru
        _
      %p119 = scmp.lt.s32.totalorder %s12, 4
      // Predicated region
      $region17: #{tpu_custom_call.1} parent=5 // pred_check
        %p120 = pneg %p119
      $region18: #{tpu_custom_call.1} parent=5 // pred_check_branch
        %122 = sbr.rel (%p120) target = $region20
      $region19: #{tpu_custom_call.1} parent=5 // pred_region
        // Predicated region
        $region21: #{tpu_custom_call.1} parent=19 // pred_check
          %p123 = pneg %p32
        $region22: #{tpu_custom_call.1} parent=19 // pred_check_branch
          %125 = sbr.rel (%p123) target = $region24
        $region23: #{tpu_custom_call.1} parent=19 // pred_region
          %s126 = smul.u32 64, %s12
          %p127 = scmp.lt.s32.totalorder %s126, 255
          %s128 = scalar_select %p127, %s126, 255
          %s129 = smul.addr %s128, 8
          %s130 = scalar_lea.vmem %s0, %s129
          %s131 = smul.u32 64, %s12
        $region24: #{tpu_custom_call.1} parent=19 // pred_fallthru
          _
      $region20: #{tpu_custom_call.1} parent=5 // pred_fallthru
        _
      %p132 = scmp.le.s32.totalorder 1, %s12
      %p133 = scmp.lt.s32.totalorder %s12, 5
      %p134 = pnand %p132, %p133
      %p135 = pneg %p134
      // Predicated region
      $region25: #{tpu_custom_call.1} parent=5 // pred_check
        _
      $region26: #{tpu_custom_call.1} parent=5 // pred_check_branch
        %137 = sbr.rel (%p134) target = $region28
      $region27: #{tpu_custom_call.1} parent=5 // pred_region
        %s138 = ssub.s32 %s12, 1
        %s139 = smul.u32 64, %s17
        %p140 = scmp.lt.s32.totalorder %s139, 255
        %s141 = scalar_select %p140, %s139, 255
        %s142 = smul.addr %s141, 8
        %s143 = scalar_lea.vmem %s0, %s142
        %p144 = pneg %p38
        %p145 = pneg %p35
        %p146 = pneg %p59
        %p147 = pneg %p56
        %p148 = pneg %p80
        %p149 = pneg %p77
        %p150 = pneg %p101
        %p151 = pneg %p98
        %s152 = smul.u32 64, %s17
        %p153 = scmp.lt.s32.totalorder %s152, 255
        %s154 = scalar_select %p153, %s152, 255
        %s155 = smul.addr %s154, 8
        %s156 = scalar_lea.vmem %s0, %s155
        %s157 = smul.u32 64, %s17
        %p158 = scmp.eq.s32.totalorder %s17, 0
        // Predicated region
        $region29: #{tpu_custom_call.1} parent=27 // pred_check
          %p159 = pneg %p158
        $region30: #{tpu_custom_call.1} parent=27 // pred_check_branch
          %161 = sbr.rel (%p159) target = $region32
        $region31: #{tpu_custom_call.1} parent=27 // pred_region
          %vm162 = vcmask 253952
          %163 = vst.msk [vmem:[#allocation2] sm:$0x1] %vm162, 0.0
          %164 = vst.msk [vmem:[#allocation4] sm:$0x1] %vm162, 0.0
        $region32: #{tpu_custom_call.1} parent=27 // pred_fallthru
          _
        %v165 = vld [vmem:[%s156] sm:$0xff]
        %v166 = vld [vmem:[%s156 + $0x8] sm:$0xff]
        %v167 = vld [vmem:[%s156 + $0x10] sm:$0xff]
        %v168 = vld [vmem:[%s156 + $0x18] sm:$0xff]
        %v169 = vld [vmem:[%s156 + $0x20] sm:$0xff]
        %v170 = vld [vmem:[%s156 + $0x28] sm:$0xff]
        %v171 = vld [vmem:[%s156 + $0x30] sm:$0xff]
        %v172 = vld [vmem:[%s156 + $0x38] sm:$0xff]
        %v173 = vld [vmem:[%s156 + $0x40] sm:$0xff]
        %v174 = vld [vmem:[%s156 + $0x48] sm:$0xff]
        %v175 = vld [vmem:[%s156 + $0x50] sm:$0xff]
        %v176 = vld [vmem:[%s156 + $0x58] sm:$0xff]
        %v177 = vld [vmem:[%s156 + $0x60] sm:$0xff]
        %v178 = vld [vmem:[%s156 + $0x68] sm:$0xff]
        %v179 = vld [vmem:[%s156 + $0x70] sm:$0xff]
        %v180 = vld [vmem:[%s156 + $0x78] sm:$0xff]
        %v181 = vld [vmem:[%s156 + $0x80] sm:$0xff]
        %v182 = vld [vmem:[%s156 + $0x88] sm:$0xff]
        %v183 = vld [vmem:[%s156 + $0x90] sm:$0xff]
        %v184 = vld [vmem:[%s156 + $0x98] sm:$0xff]
        %v185 = vld [vmem:[%s156 + $0xa0] sm:$0xff]
        %v186 = vld [vmem:[%s156 + $0xa8] sm:$0xff]
        %v187 = vld [vmem:[%s156 + $0xb0] sm:$0xff]
        %v188 = vld [vmem:[%s156 + $0xb8] sm:$0xff]
        %v189 = vld [vmem:[%s156 + $0xc0] sm:$0xff]
        %v190 = vld [vmem:[%s156 + $0xc8] sm:$0xff]
        %v191 = vld [vmem:[%s156 + $0xd0] sm:$0xff]
        %v192 = vld [vmem:[%s156 + $0xd8] sm:$0xff]
        %v193 = vld [vmem:[%s156 + $0xe0] sm:$0xff]
        %v194 = vld [vmem:[%s156 + $0xe8] sm:$0xff]
        %v195 = vld [vmem:[%s156 + $0xf0] sm:$0xff]
        %v196 = vld [vmem:[%s156 + $0xf8] sm:$0xff]
        %v197 = vld [vmem:[%s156 + $0x100] sm:$0xff]
        %v198 = vld [vmem:[%s156 + $0x108] sm:$0xff]
        %v199 = vld [vmem:[%s156 + $0x110] sm:$0xff]
        %v200 = vld [vmem:[%s156 + $0x118] sm:$0xff]
        %v201 = vld [vmem:[%s156 + $0x120] sm:$0xff]
        %v202 = vld [vmem:[%s156 + $0x128] sm:$0xff]
        %v203 = vld [vmem:[%s156 + $0x130] sm:$0xff]
        %v204 = vld [vmem:[%s156 + $0x138] sm:$0xff]
        %v205 = vld [vmem:[%s156 + $0x140] sm:$0xff]
        %v206 = vld [vmem:[%s156 + $0x148] sm:$0xff]
        %v207 = vld [vmem:[%s156 + $0x150] sm:$0xff]
        %v208 = vld [vmem:[%s156 + $0x158] sm:$0xff]
        %v209 = vld [vmem:[%s156 + $0x160] sm:$0xff]
        %v210 = vld [vmem:[%s156 + $0x168] sm:$0xff]
        %v211 = vld [vmem:[%s156 + $0x170] sm:$0xff]
        %v212 = vld [vmem:[%s156 + $0x178] sm:$0xff]
        %v213 = vld [vmem:[%s156 + $0x180] sm:$0xff]
        %v214 = vld [vmem:[%s156 + $0x188] sm:$0xff]
        %v215 = vld [vmem:[%s156 + $0x190] sm:$0xff]
        %v216 = vld [vmem:[%s156 + $0x198] sm:$0xff]
        %v217 = vld [vmem:[%s156 + $0x1a0] sm:$0xff]
        %v218 = vld [vmem:[%s156 + $0x1a8] sm:$0xff]
        %v219 = vld [vmem:[%s156 + $0x1b0] sm:$0xff]
        %v220 = vld [vmem:[%s156 + $0x1b8] sm:$0xff]
        %v221 = vld [vmem:[%s156 + $0x1c0] sm:$0xff]
        %v222 = vld [vmem:[%s156 + $0x1c8] sm:$0xff]
        %v223 = vld [vmem:[%s156 + $0x1d0] sm:$0xff]
        %v224 = vld [vmem:[%s156 + $0x1d8] sm:$0xff]
        %v225 = vld [vmem:[%s156 + $0x1e0] sm:$0xff]
        %v226 = vld [vmem:[%s156 + $0x1e8] sm:$0xff]
        %v227 = vld [vmem:[%s156 + $0x1f0] sm:$0xff]
        %v228 = vld [vmem:[%s156 + $0x1f8] sm:$0xff]
        %v229 = vld [vmem:[%s1] sm:$0xff]
        %v230 = vld [vmem:[%s1 + $0x8] sm:$0x3]
        %vm231 = vcmask 80896
        %v233 = vsel %vm231, %v165, 0
        %v236 = vsel %vm231, %v166, 0
        %v239 = vsel %vm231, %v167, 0
        %v242 = vsel %vm231, %v168, 0
        %v245 = vsel %vm231, %v169, 0
        %v248 = vsel %vm231, %v170, 0
        %v251 = vsel %vm231, %v171, 0
        %v254 = vsel %vm231, %v172, 0
        %v257 = vsel %vm231, %v173, 0
        %v260 = vsel %vm231, %v174, 0
        %v263 = vsel %vm231, %v175, 0
        %v266 = vsel %vm231, %v176, 0
        %v269 = vsel %vm231, %v177, 0
        %v272 = vsel %vm231, %v178, 0
        %v275 = vsel %vm231, %v179, 0
        %v278 = vsel %vm231, %v180, 0
        %v281 = vsel %vm231, %v181, 0
        %v284 = vsel %vm231, %v182, 0
        %v287 = vsel %vm231, %v183, 0
        %v290 = vsel %vm231, %v184, 0
        %v293 = vsel %vm231, %v185, 0
        %v296 = vsel %vm231, %v186, 0
        %v299 = vsel %vm231, %v187, 0
        %v302 = vsel %vm231, %v188, 0
        %v305 = vsel %vm231, %v189, 0
        %v308 = vsel %vm231, %v190, 0
        %v311 = vsel %vm231, %v191, 0
        %v314 = vsel %vm231, %v192, 0
        %v317 = vsel %vm231, %v193, 0
        %v320 = vsel %vm231, %v194, 0
        %v323 = vsel %vm231, %v195, 0
        %v326 = vsel %vm231, %v196, 0
        %v329 = vsel %vm231, %v197, 0
        %v332 = vsel %vm231, %v198, 0
        %v335 = vsel %vm231, %v199, 0
        %v338 = vsel %vm231, %v200, 0
        %v341 = vsel %vm231, %v201, 0
        %v344 = vsel %vm231, %v202, 0
        %v347 = vsel %vm231, %v203, 0
        %v350 = vsel %vm231, %v204, 0
        %v353 = vsel %vm231, %v205, 0
        %v356 = vsel %vm231, %v206, 0
        %v359 = vsel %vm231, %v207, 0
        %v362 = vsel %vm231, %v208, 0
        %v365 = vsel %vm231, %v209, 0
        %v368 = vsel %vm231, %v210, 0
        %v371 = vsel %vm231, %v211, 0
        %v374 = vsel %vm231, %v212, 0
        %v377 = vsel %vm231, %v213, 0
        %v380 = vsel %vm231, %v214, 0
        %v383 = vsel %vm231, %v215, 0
        %v386 = vsel %vm231, %v216, 0
        %v389 = vsel %vm231, %v217, 0
        %v392 = vsel %vm231, %v218, 0
        %v395 = vsel %vm231, %v219, 0
        %v398 = vsel %vm231, %v220, 0
        %v401 = vsel %vm231, %v221, 0
        %v404 = vsel %vm231, %v222, 0
        %v407 = vsel %vm231, %v223, 0
        %v410 = vsel %vm231, %v224, 0
        %v413 = vsel %vm231, %v225, 0
        %v416 = vsel %vm231, %v226, 0
        %v419 = vsel %vm231, %v227, 0
        %v422 = vsel %vm231, %v228, 0
        %vm424 = vcmask 1041408
        %v426 = vsel %vm424, %v230, 0
        %428 = vmatpush.msra.mxu0 0.0
        %429 = vmatpush.msra.mxu0 0.0
        %430 = vmatpush.msra.mxu0 0.0
        %431 = vmatpush.msra.mxu0 0.0
        %432 = vmatpush.msra.mxu0 0.0
        %433 = vmatpush.msra.mxu0 0.0
        %434 = vmatpush.msra.mxu0 0.0
        %435 = vmatpush.msra.mxu0 0.0
        %436 = vmatpush.msra.mxu0 0.0
        %437 = vmatpush.msra.mxu0 0.0
        %438 = vmatpush.msra.mxu0 0.0
        %439 = vmatpush.msra.mxu0 0.0
        %440 = vmatpush.msra.mxu0 0.0
        %441 = vmatpush.msra.mxu0 0.0
        %442 = vmatpush.msra.mxu0 %v426
        %443 = vmatpush.msra.mxu0 %v229
        %444 = vmatmul.f32.gmra.mxu0 %v233
        %v445 = vpop.f32.mrf.mxu0
        %v446 = vadd.f32 0.0, %v445
        %447 = vmatmul.f32.gmra.mxu0 %v236
        %v448 = vpop.f32.mrf.mxu0
        %v449 = vadd.f32 0.0, %v448
        %450 = vmatmul.f32.gmra.mxu0 %v239
        %v451 = vpop.f32.mrf.mxu0
        %v452 = vadd.f32 0.0, %v451
        %453 = vmatmul.f32.gmra.mxu0 %v242
        %v454 = vpop.f32.mrf.mxu0
        %v455 = vadd.f32 0.0, %v454
        %456 = vmatmul.f32.gmra.mxu0 %v245
        %v457 = vpop.f32.mrf.mxu0
        %v458 = vadd.f32 0.0, %v457
        %459 = vmatmul.f32.gmra.mxu0 %v248
        %v460 = vpop.f32.mrf.mxu0
        %v461 = vadd.f32 0.0, %v460
        %462 = vmatmul.f32.gmra.mxu0 %v251
        %v463 = vpop.f32.mrf.mxu0
        %v464 = vadd.f32 0.0, %v463
        %465 = vmatmul.f32.gmra.mxu0 %v254
        %v466 = vpop.f32.mrf.mxu0
        %v467 = vadd.f32 0.0, %v466
        %468 = vmatmul.f32.gmra.mxu0 %v257
        %v469 = vpop.f32.mrf.mxu0
        %v470 = vadd.f32 0.0, %v469
        %471 = vmatmul.f32.gmra.mxu0 %v260
        %v472 = vpop.f32.mrf.mxu0
        %v473 = vadd.f32 0.0, %v472
        %474 = vmatmul.f32.gmra.mxu0 %v263
        %v475 = vpop.f32.mrf.mxu0
        %v476 = vadd.f32 0.0, %v475
        %477 = vmatmul.f32.gmra.mxu0 %v266
        %v478 = vpop.f32.mrf.mxu0
        %v479 = vadd.f32 0.0, %v478
        %480 = vmatmul.f32.gmra.mxu0 %v269
        %v481 = vpop.f32.mrf.mxu0
        %v482 = vadd.f32 0.0, %v481
        %483 = vmatmul.f32.gmra.mxu0 %v272
        %v484 = vpop.f32.mrf.mxu0
        %v485 = vadd.f32 0.0, %v484
        %486 = vmatmul.f32.gmra.mxu0 %v275
        %v487 = vpop.f32.mrf.mxu0
        %v488 = vadd.f32 0.0, %v487
        %489 = vmatmul.f32.gmra.mxu0 %v278
        %v490 = vpop.f32.mrf.mxu0
        %v491 = vadd.f32 0.0, %v490
        %492 = vmatmul.f32.gmra.mxu0 %v281
        %v493 = vpop.f32.mrf.mxu0
        %v494 = vadd.f32 0.0, %v493
        %495 = vmatmul.f32.gmra.mxu0 %v284
        %v496 = vpop.f32.mrf.mxu0
        %v497 = vadd.f32 0.0, %v496
        %498 = vmatmul.f32.gmra.mxu0 %v287
        %v499 = vpop.f32.mrf.mxu0
        %v500 = vadd.f32 0.0, %v499
        %501 = vmatmul.f32.gmra.mxu0 %v290
        %v502 = vpop.f32.mrf.mxu0
        %v503 = vadd.f32 0.0, %v502
        %504 = vmatmul.f32.gmra.mxu0 %v293
        %v505 = vpop.f32.mrf.mxu0
        %v506 = vadd.f32 0.0, %v505
        %507 = vmatmul.f32.gmra.mxu0 %v296
        %v508 = vpop.f32.mrf.mxu0
        %v509 = vadd.f32 0.0, %v508
        %510 = vmatmul.f32.gmra.mxu0 %v299
        %v511 = vpop.f32.mrf.mxu0
        %v512 = vadd.f32 0.0, %v511
        %513 = vmatmul.f32.gmra.mxu0 %v302
        %v514 = vpop.f32.mrf.mxu0
        %v515 = vadd.f32 0.0, %v514
        %516 = vmatmul.f32.gmra.mxu0 %v305
        %v517 = vpop.f32.mrf.mxu0
        %v518 = vadd.f32 0.0, %v517
        %519 = vmatmul.f32.gmra.mxu0 %v308
        %v520 = vpop.f32.mrf.mxu0
        %v521 = vadd.f32 0.0, %v520
        %522 = vmatmul.f32.gmra.mxu0 %v311
        %v523 = vpop.f32.mrf.mxu0
        %v524 = vadd.f32 0.0, %v523
        %525 = vmatmul.f32.gmra.mxu0 %v314
        %v526 = vpop.f32.mrf.mxu0
        %v527 = vadd.f32 0.0, %v526
        %528 = vmatmul.f32.gmra.mxu0 %v317
        %v529 = vpop.f32.mrf.mxu0
        %v530 = vadd.f32 0.0, %v529
        %531 = vmatmul.f32.gmra.mxu0 %v320
        %v532 = vpop.f32.mrf.mxu0
        %v533 = vadd.f32 0.0, %v532
        %534 = vmatmul.f32.gmra.mxu0 %v323
        %v535 = vpop.f32.mrf.mxu0
        %v536 = vadd.f32 0.0, %v535
        %537 = vmatmul.f32.gmra.mxu0 %v326
        %v538 = vpop.f32.mrf.mxu0
        %v539 = vadd.f32 0.0, %v538
        %540 = vmatmul.f32.gmra.mxu0 %v329
        %v541 = vpop.f32.mrf.mxu0
        %v542 = vadd.f32 0.0, %v541
        %543 = vmatmul.f32.gmra.mxu0 %v332
        %v544 = vpop.f32.mrf.mxu0
        %v545 = vadd.f32 0.0, %v544
        %546 = vmatmul.f32.gmra.mxu0 %v335
        %v547 = vpop.f32.mrf.mxu0
        %v548 = vadd.f32 0.0, %v547
        %549 = vmatmul.f32.gmra.mxu0 %v338
        %v550 = vpop.f32.mrf.mxu0
        %v551 = vadd.f32 0.0, %v550
        %552 = vmatmul.f32.gmra.mxu0 %v341
        %v553 = vpop.f32.mrf.mxu0
        %v554 = vadd.f32 0.0, %v553
        %555 = vmatmul.f32.gmra.mxu0 %v344
        %v556 = vpop.f32.mrf.mxu0
        %v557 = vadd.f32 0.0, %v556
        %558 = vmatmul.f32.gmra.mxu0 %v347
        %v559 = vpop.f32.mrf.mxu0
        %v560 = vadd.f32 0.0, %v559
        %561 = vmatmul.f32.gmra.mxu0 %v350
        %v562 = vpop.f32.mrf.mxu0
        %v563 = vadd.f32 0.0, %v562
        %564 = vmatmul.f32.gmra.mxu0 %v353
        %v565 = vpop.f32.mrf.mxu0
        %v566 = vadd.f32 0.0, %v565
        %567 = vmatmul.f32.gmra.mxu0 %v356
        %v568 = vpop.f32.mrf.mxu0
        %v569 = vadd.f32 0.0, %v568
        %570 = vmatmul.f32.gmra.mxu0 %v359
        %v571 = vpop.f32.mrf.mxu0
        %v572 = vadd.f32 0.0, %v571
        %573 = vmatmul.f32.gmra.mxu0 %v362
        %v574 = vpop.f32.mrf.mxu0
        %v575 = vadd.f32 0.0, %v574
        %576 = vmatmul.f32.gmra.mxu0 %v365
        %v577 = vpop.f32.mrf.mxu0
        %v578 = vadd.f32 0.0, %v577
        %579 = vmatmul.f32.gmra.mxu0 %v368
        %v580 = vpop.f32.mrf.mxu0
        %v581 = vadd.f32 0.0, %v580
        %582 = vmatmul.f32.gmra.mxu0 %v371
        %v583 = vpop.f32.mrf.mxu0
        %v584 = vadd.f32 0.0, %v583
        %585 = vmatmul.f32.gmra.mxu0 %v374
        %v586 = vpop.f32.mrf.mxu0
        %v587 = vadd.f32 0.0, %v586
        %588 = vmatmul.f32.gmra.mxu0 %v377
        %v589 = vpop.f32.mrf.mxu0
        %v590 = vadd.f32 0.0, %v589
        %591 = vmatmul.f32.gmra.mxu0 %v380
        %v592 = vpop.f32.mrf.mxu0
        %v593 = vadd.f32 0.0, %v592
        %594 = vmatmul.f32.gmra.mxu0 %v383
        %v595 = vpop.f32.mrf.mxu0
        %v596 = vadd.f32 0.0, %v595
        %597 = vmatmul.f32.gmra.mxu0 %v386
        %v598 = vpop.f32.mrf.mxu0
        %v599 = vadd.f32 0.0, %v598
        %600 = vmatmul.f32.gmra.mxu0 %v389
        %v601 = vpop.f32.mrf.mxu0
        %v602 = vadd.f32 0.0, %v601
        %603 = vmatmul.f32.gmra.mxu0 %v392
        %v604 = vpop.f32.mrf.mxu0
        %v605 = vadd.f32 0.0, %v604
        %606 = vmatmul.f32.gmra.mxu0 %v395
        %v607 = vpop.f32.mrf.mxu0
        %v608 = vadd.f32 0.0, %v607
        %609 = vmatmul.f32.gmra.mxu0 %v398
        %v610 = vpop.f32.mrf.mxu0
        %v611 = vadd.f32 0.0, %v610
        %612 = vmatmul.f32.gmra.mxu0 %v401
        %v613 = vpop.f32.mrf.mxu0
        %v614 = vadd.f32 0.0, %v613
        %615 = vmatmul.f32.gmra.mxu0 %v404
        %v616 = vpop.f32.mrf.mxu0
        %v617 = vadd.f32 0.0, %v616
        %618 = vmatmul.f32.gmra.mxu0 %v407
        %v619 = vpop.f32.mrf.mxu0
        %v620 = vadd.f32 0.0, %v619
        %621 = vmatmul.f32.gmra.mxu0 %v410
        %v622 = vpop.f32.mrf.mxu0
        %v623 = vadd.f32 0.0, %v622
        %624 = vmatmul.f32.gmra.mxu0 %v413
        %v625 = vpop.f32.mrf.mxu0
        %v626 = vadd.f32 0.0, %v625
        %627 = vmatmul.f32.gmra.mxu0 %v416
        %v628 = vpop.f32.mrf.mxu0
        %v629 = vadd.f32 0.0, %v628
        %630 = vmatmul.f32.gmra.mxu0 %v419
        %v631 = vpop.f32.mrf.mxu0
        %v632 = vadd.f32 0.0, %v631
        %633 = vmatmul.f32.gmra.mxu0 %v422
        %v634 = vpop.f32.mrf.mxu0
        %v635 = vadd.f32 0.0, %v634
        %636 = vdwg.mxu0
        %v637 = vld [vmem:[#allocation2] sm:$0x1]
        %vm638 = vcmask 261120
        %v639 = vsel %vm638, %v446, 0.0
        %v640 = vsel %vm638, %v449, 0.0
        %v641 = vadd.f32 %v639, %v640
        %v642 = vsel %vm638, %v452, 0.0
        %v643 = vadd.f32 %v641, %v642
        %v644 = vsel %vm638, %v455, 0.0
        %v645 = vadd.f32 %v643, %v644
        %v646 = vsel %vm638, %v458, 0.0
        %v647 = vadd.f32 %v645, %v646
        %v648 = vsel %vm638, %v461, 0.0
        %v649 = vadd.f32 %v647, %v648
        %v650 = vsel %vm638, %v464, 0.0
        %v651 = vadd.f32 %v649, %v650
        %v652 = vsel %vm638, %v467, 0.0
        %v653 = vadd.f32 %v651, %v652
        %v654 = vsel %vm638, %v470, 0.0
        %v655 = vadd.f32 %v653, %v654
        %v656 = vsel %vm638, %v473, 0.0
        %v657 = vadd.f32 %v655, %v656
        %v658 = vsel %vm638, %v476, 0.0
        %v659 = vadd.f32 %v657, %v658
        %v660 = vsel %vm638, %v479, 0.0
        %v661 = vadd.f32 %v659, %v660
        %v662 = vsel %vm638, %v482, 0.0
        %v663 = vadd.f32 %v661, %v662
        %v664 = vsel %vm638, %v485, 0.0
        %v665 = vadd.f32 %v663, %v664
        %v666 = vsel %vm638, %v488, 0.0
        %v667 = vadd.f32 %v665, %v666
        %v668 = vsel %vm638, %v491, 0.0
        %v669 = vadd.f32 %v667, %v668
        %v670 = vsel %vm638, %v494, 0.0
        %v671 = vadd.f32 %v669, %v670
        %v672 = vsel %vm638, %v497, 0.0
        %v673 = vadd.f32 %v671, %v672
        %v674 = vsel %vm638, %v500, 0.0
        %v675 = vadd.f32 %v673, %v674
        %v676 = vsel %vm638, %v503, 0.0
        %v677 = vadd.f32 %v675, %v676
        %v678 = vsel %vm638, %v506, 0.0
        %v679 = vadd.f32 %v677, %v678
        %v680 = vsel %vm638, %v509, 0.0
        %v681 = vadd.f32 %v679, %v680
        %v682 = vsel %vm638, %v512, 0.0
        %v683 = vadd.f32 %v681, %v682
        %v684 = vsel %vm638, %v515, 0.0
        %v685 = vadd.f32 %v683, %v684
        %v686 = vsel %vm638, %v518, 0.0
        %v687 = vadd.f32 %v685, %v686
        %v688 = vsel %vm638, %v521, 0.0
        %v689 = vadd.f32 %v687, %v688
        %v690 = vsel %vm638, %v524, 0.0
        %v691 = vadd.f32 %v689, %v690
        %v692 = vsel %vm638, %v527, 0.0
        %v693 = vadd.f32 %v691, %v692
        %v694 = vsel %vm638, %v530, 0.0
        %v695 = vadd.f32 %v693, %v694
        %v696 = vsel %vm638, %v533, 0.0
        %v697 = vadd.f32 %v695, %v696
        %v698 = vsel %vm638, %v536, 0.0
        %v699 = vadd.f32 %v697, %v698
        %v700 = vsel %vm638, %v539, 0.0
        %v701 = vadd.f32 %v699, %v700
        %v702 = vsel %vm638, %v542, 0.0
        %v703 = vadd.f32 %v701, %v702
        %v704 = vsel %vm638, %v545, 0.0
        %v705 = vadd.f32 %v703, %v704
        %v706 = vsel %vm638, %v548, 0.0
        %v707 = vadd.f32 %v705, %v706
        %v708 = vsel %vm638, %v551, 0.0
        %v709 = vadd.f32 %v707, %v708
        %v710 = vsel %vm638, %v554, 0.0
        %v711 = vadd.f32 %v709, %v710
        %v712 = vsel %vm638, %v557, 0.0
        %v713 = vadd.f32 %v711, %v712
        %v714 = vsel %vm638, %v560, 0.0
        %v715 = vadd.f32 %v713, %v714
        %v716 = vsel %vm638, %v563, 0.0
        %v717 = vadd.f32 %v715, %v716
        %v718 = vsel %vm638, %v566, 0.0
        %v719 = vadd.f32 %v717, %v718
        %v720 = vsel %vm638, %v569, 0.0
        %v721 = vadd.f32 %v719, %v720
        %v722 = vsel %vm638, %v572, 0.0
        %v723 = vadd.f32 %v721, %v722
        %v724 = vsel %vm638, %v575, 0.0
        %v725 = vadd.f32 %v723, %v724
        %v726 = vsel %vm638, %v578, 0.0
        %v727 = vadd.f32 %v725, %v726
        %v728 = vsel %vm638, %v581, 0.0
        %v729 = vadd.f32 %v727, %v728
        %v730 = vsel %vm638, %v584, 0.0
        %v731 = vadd.f32 %v729, %v730
        %v732 = vsel %vm638, %v587, 0.0
        %v733 = vadd.f32 %v731, %v732
        %v734 = vsel %vm638, %v590, 0.0
        %v735 = vadd.f32 %v733, %v734
        %v736 = vsel %vm638, %v593, 0.0
        %v737 = vadd.f32 %v735, %v736
        %v738 = vsel %vm638, %v596, 0.0
        %v739 = vadd.f32 %v737, %v738
        %v740 = vsel %vm638, %v599, 0.0
        %v741 = vadd.f32 %v739, %v740
        %v742 = vsel %vm638, %v602, 0.0
        %v743 = vadd.f32 %v741, %v742
        %v744 = vsel %vm638, %v605, 0.0
        %v745 = vadd.f32 %v743, %v744
        %v746 = vsel %vm638, %v608, 0.0
        %v747 = vadd.f32 %v745, %v746
        %v748 = vsel %vm638, %v611, 0.0
        %v749 = vadd.f32 %v747, %v748
        %v750 = vsel %vm638, %v614, 0.0
        %v751 = vadd.f32 %v749, %v750
        %v752 = vsel %vm638, %v617, 0.0
        %v753 = vadd.f32 %v751, %v752
        %v754 = vsel %vm638, %v620, 0.0
        %v755 = vadd.f32 %v753, %v754
        %v756 = vsel %vm638, %v623, 0.0
        %v757 = vadd.f32 %v755, %v756
        %v758 = vsel %vm638, %v626, 0.0
        %v759 = vadd.f32 %v757, %v758
        %v760 = vsel %vm638, %v629, 0.0
        %v761 = vadd.f32 %v759, %v760
        %v762 = vsel %vm638, %v632, 0.0
        %v763 = vadd.f32 %v761, %v762
        %v764 = vsel %vm638, %v635, 0.0
        %v765 = vadd.f32 %v763, %v764
        %v766 = vrot.slane %v765, 4
        %v767 = vadd.f32 %v765, %v766
        %v768 = vrot.slane %v767, 2
        %v769 = vadd.f32 %v767, %v768
        %v770 = vrot.slane %v769, 1
        %v771 = vadd.f32 %v769, %v770
        %v772 = vadd.f32 %v637, %v771
        %vm773 = vcmask 253952
        %774 = vst.msk [vmem:[#allocation2] sm:$0x1] %vm773, %v772
        %v775 = vld [vmem:[#allocation4] sm:$0x1]
        %v776 = vmul.f32 %v446, %v446
        %v777 = vmul.f32 %v449, %v449
        %v778 = vmul.f32 %v452, %v452
        %v779 = vmul.f32 %v455, %v455
        %v780 = vmul.f32 %v458, %v458
        %v781 = vmul.f32 %v461, %v461
        %v782 = vmul.f32 %v464, %v464
        %v783 = vmul.f32 %v467, %v467
        %v784 = vmul.f32 %v470, %v470
        %v785 = vmul.f32 %v473, %v473
        %v786 = vmul.f32 %v476, %v476
        %v787 = vmul.f32 %v479, %v479
        %v788 = vmul.f32 %v482, %v482
        %v789 = vmul.f32 %v485, %v485
        %v790 = vmul.f32 %v488, %v488
        %v791 = vmul.f32 %v491, %v491
        %v792 = vmul.f32 %v494, %v494
        %v793 = vmul.f32 %v497, %v497
        %v794 = vmul.f32 %v500, %v500
        %v795 = vmul.f32 %v503, %v503
        %v796 = vmul.f32 %v506, %v506
        %v797 = vmul.f32 %v509, %v509
        %v798 = vmul.f32 %v512, %v512
        %v799 = vmul.f32 %v515, %v515
        %v800 = vmul.f32 %v518, %v518
        %v801 = vmul.f32 %v521, %v521
        %v802 = vmul.f32 %v524, %v524
        %v803 = vmul.f32 %v527, %v527
        %v804 = vmul.f32 %v530, %v530
        %v805 = vmul.f32 %v533, %v533
        %v806 = vmul.f32 %v536, %v536
        %v807 = vmul.f32 %v539, %v539
        %v808 = vmul.f32 %v542, %v542
        %v809 = vmul.f32 %v545, %v545
        %v810 = vmul.f32 %v548, %v548
        %v811 = vmul.f32 %v551, %v551
        %v812 = vmul.f32 %v554, %v554
        %v813 = vmul.f32 %v557, %v557
        %v814 = vmul.f32 %v560, %v560
        %v815 = vmul.f32 %v563, %v563
        %v816 = vmul.f32 %v566, %v566
        %v817 = vmul.f32 %v569, %v569
        %v818 = vmul.f32 %v572, %v572
        %v819 = vmul.f32 %v575, %v575
        %v820 = vmul.f32 %v578, %v578
        %v821 = vmul.f32 %v581, %v581
        %v822 = vmul.f32 %v584, %v584
        %v823 = vmul.f32 %v587, %v587
        %v824 = vmul.f32 %v590, %v590
        %v825 = vmul.f32 %v593, %v593
        %v826 = vmul.f32 %v596, %v596
        %v827 = vmul.f32 %v599, %v599
        %v828 = vmul.f32 %v602, %v602
        %v829 = vmul.f32 %v605, %v605
        %v830 = vmul.f32 %v608, %v608
        %v831 = vmul.f32 %v611, %v611
        %v832 = vmul.f32 %v614, %v614
        %v833 = vmul.f32 %v617, %v617
        %v834 = vmul.f32 %v620, %v620
        %v835 = vmul.f32 %v623, %v623
        %v836 = vmul.f32 %v626, %v626
        %v837 = vmul.f32 %v629, %v629
        %v838 = vmul.f32 %v632, %v632
        %v839 = vmul.f32 %v635, %v635
        %v840 = vsel %vm638, %v776, 0.0
        %v841 = vsel %vm638, %v777, 0.0
        %v842 = vadd.f32 %v840, %v841
        %v843 = vsel %vm638, %v778, 0.0
        %v844 = vadd.f32 %v842, %v843
        %v845 = vsel %vm638, %v779, 0.0
        %v846 = vadd.f32 %v844, %v845
        %v847 = vsel %vm638, %v780, 0.0
        %v848 = vadd.f32 %v846, %v847
        %v849 = vsel %vm638, %v781, 0.0
        %v850 = vadd.f32 %v848, %v849
        %v851 = vsel %vm638, %v782, 0.0
        %v852 = vadd.f32 %v850, %v851
        %v853 = vsel %vm638, %v783, 0.0
        %v854 = vadd.f32 %v852, %v853
        %v855 = vsel %vm638, %v784, 0.0
        %v856 = vadd.f32 %v854, %v855
        %v857 = vsel %vm638, %v785, 0.0
        %v858 = vadd.f32 %v856, %v857
        %v859 = vsel %vm638, %v786, 0.0
        %v860 = vadd.f32 %v858, %v859
        %v861 = vsel %vm638, %v787, 0.0
        %v862 = vadd.f32 %v860, %v861
        %v863 = vsel %vm638, %v788, 0.0
        %v864 = vadd.f32 %v862, %v863
        %v865 = vsel %vm638, %v789, 0.0
        %v866 = vadd.f32 %v864, %v865
        %v867 = vsel %vm638, %v790, 0.0
        %v868 = vadd.f32 %v866, %v867
        %v869 = vsel %vm638, %v791, 0.0
        %v870 = vadd.f32 %v868, %v869
        %v871 = vsel %vm638, %v792, 0.0
        %v872 = vadd.f32 %v870, %v871
        %v873 = vsel %vm638, %v793, 0.0
        %v874 = vadd.f32 %v872, %v873
        %v875 = vsel %vm638, %v794, 0.0
        %v876 = vadd.f32 %v874, %v875
        %v877 = vsel %vm638, %v795, 0.0
        %v878 = vadd.f32 %v876, %v877
        %v879 = vsel %vm638, %v796, 0.0
        %v880 = vadd.f32 %v878, %v879
        %v881 = vsel %vm638, %v797, 0.0
        %v882 = vadd.f32 %v880, %v881
        %v883 = vsel %vm638, %v798, 0.0
        %v884 = vadd.f32 %v882, %v883
        %v885 = vsel %vm638, %v799, 0.0
        %v886 = vadd.f32 %v884, %v885
        %v887 = vsel %vm638, %v800, 0.0
        %v888 = vadd.f32 %v886, %v887
        %v889 = vsel %vm638, %v801, 0.0
        %v890 = vadd.f32 %v888, %v889
        %v891 = vsel %vm638, %v802, 0.0
        %v892 = vadd.f32 %v890, %v891
        %v893 = vsel %vm638, %v803, 0.0
        %v894 = vadd.f32 %v892, %v893
        %v895 = vsel %vm638, %v804, 0.0
        %v896 = vadd.f32 %v894, %v895
        %v897 = vsel %vm638, %v805, 0.0
        %v898 = vadd.f32 %v896, %v897
        %v899 = vsel %vm638, %v806, 0.0
        %v900 = vadd.f32 %v898, %v899
        %v901 = vsel %vm638, %v807, 0.0
        %v902 = vadd.f32 %v900, %v901
        %v903 = vsel %vm638, %v808, 0.0
        %v904 = vadd.f32 %v902, %v903
        %v905 = vsel %vm638, %v809, 0.0
        %v906 = vadd.f32 %v904, %v905
        %v907 = vsel %vm638, %v810, 0.0
        %v908 = vadd.f32 %v906, %v907
        %v909 = vsel %vm638, %v811, 0.0
        %v910 = vadd.f32 %v908, %v909
        %v911 = vsel %vm638, %v812, 0.0
        %v912 = vadd.f32 %v910, %v911
        %v913 = vsel %vm638, %v813, 0.0
        %v914 = vadd.f32 %v912, %v913
        %v915 = vsel %vm638, %v814, 0.0
        %v916 = vadd.f32 %v914, %v915
        %v917 = vsel %vm638, %v815, 0.0
        %v918 = vadd.f32 %v916, %v917
        %v919 = vsel %vm638, %v816, 0.0
        %v920 = vadd.f32 %v918, %v919
        %v921 = vsel %vm638, %v817, 0.0
        %v922 = vadd.f32 %v920, %v921
        %v923 = vsel %vm638, %v818, 0.0
        %v924 = vadd.f32 %v922, %v923
        %v925 = vsel %vm638, %v819, 0.0
        %v926 = vadd.f32 %v924, %v925
        %v927 = vsel %vm638, %v820, 0.0
        %v928 = vadd.f32 %v926, %v927
        %v929 = vsel %vm638, %v821, 0.0
        %v930 = vadd.f32 %v928, %v929
        %v931 = vsel %vm638, %v822, 0.0
        %v932 = vadd.f32 %v930, %v931
        %v933 = vsel %vm638, %v823, 0.0
        %v934 = vadd.f32 %v932, %v933
        %v935 = vsel %vm638, %v824, 0.0
        %v936 = vadd.f32 %v934, %v935
        %v937 = vsel %vm638, %v825, 0.0
        %v938 = vadd.f32 %v936, %v937
        %v939 = vsel %vm638, %v826, 0.0
        %v940 = vadd.f32 %v938, %v939
        %v941 = vsel %vm638, %v827, 0.0
        %v942 = vadd.f32 %v940, %v941
        %v943 = vsel %vm638, %v828, 0.0
        %v944 = vadd.f32 %v942, %v943
        %v945 = vsel %vm638, %v829, 0.0
        %v946 = vadd.f32 %v944, %v945
        %v947 = vsel %vm638, %v830, 0.0
        %v948 = vadd.f32 %v946, %v947
        %v949 = vsel %vm638, %v831, 0.0
        %v950 = vadd.f32 %v948, %v949
        %v951 = vsel %vm638, %v832, 0.0
        %v952 = vadd.f32 %v950, %v951
        %v953 = vsel %vm638, %v833, 0.0
        %v954 = vadd.f32 %v952, %v953
        %v955 = vsel %vm638, %v834, 0.0
        %v956 = vadd.f32 %v954, %v955
        %v957 = vsel %vm638, %v835, 0.0
        %v958 = vadd.f32 %v956, %v957
        %v959 = vsel %vm638, %v836, 0.0
        %v960 = vadd.f32 %v958, %v959
        %v961 = vsel %vm638, %v837, 0.0
        %v962 = vadd.f32 %v960, %v961
        %v963 = vsel %vm638, %v838, 0.0
        %v964 = vadd.f32 %v962, %v963
        %v965 = vsel %vm638, %v839, 0.0
        %v966 = vadd.f32 %v964, %v965
        %v967 = vrot.slane %v966, 4
        %v968 = vadd.f32 %v966, %v967
        %v969 = vrot.slane %v968, 2
        %v970 = vadd.f32 %v968, %v969
        %v971 = vrot.slane %v970, 1
        %v972 = vadd.f32 %v970, %v971
        %v973 = vadd.f32 %v775, %v972
        %974 = vst.msk [vmem:[#allocation4] sm:$0x1] %vm773, %v973
        // Predicated region
        $region33: #{tpu_custom_call.1} parent=27 // pred_check
          %p975 = pneg %p77
        $region34: #{tpu_custom_call.1} parent=27 // pred_check_branch
          %977 = sbr.rel (%p975) target = $region36
        $region35: #{tpu_custom_call.1} parent=27 // pred_region
          %979 = vsyncadd [#allocation3], 0
          %s981 = sshll.u32 [#allocation2], 4
          %s982 = int_to_ptr.vmem [resolvable:$true] %s981
          %s983 = sshll.u32 %s2, 4
          %s984 = int_to_ptr.hbm [resolvable:$true] %s983
          %986 = dma.vmem_to_hbm [thread:$0]  %s982, 16, %s984, [#allocation3]
        $region36: #{tpu_custom_call.1} parent=27 // pred_fallthru
          _
        // Predicated region
        $region37: #{tpu_custom_call.1} parent=27 // pred_check
          %p987 = pneg %p98
        $region38: #{tpu_custom_call.1} parent=27 // pred_check_branch
          %989 = sbr.rel (%p987) target = $region40
        $region39: #{tpu_custom_call.1} parent=27 // pred_region
          %991 = vsyncadd [#allocation5], 0
          %s993 = sshll.u32 [#allocation4], 4
          %s994 = int_to_ptr.vmem [resolvable:$true] %s993
          %s995 = sshll.u32 %s3, 4
          %s996 = int_to_ptr.hbm [resolvable:$true] %s995
          %998 = dma.vmem_to_hbm [thread:$0]  %s994, 16, %s996, [#allocation5]
        $region40: #{tpu_custom_call.1} parent=27 // pred_fallthru
          _
        // Predicated region
        $region41: #{tpu_custom_call.1} parent=27 // pred_check
          %p999 = pneg %p77
        $region42: #{tpu_custom_call.1} parent=27 // pred_check_branch
          %1001 = sbr.rel (%p999) target = $region44
        $region43: #{tpu_custom_call.1} parent=27 // pred_region
          %1003 = dma.done [#allocation3], 16
        $region44: #{tpu_custom_call.1} parent=27 // pred_fallthru
          _
        // Predicated region
        $region45: #{tpu_custom_call.1} parent=27 // pred_check
          %p1004 = pneg %p98
        $region46: #{tpu_custom_call.1} parent=27 // pred_check_branch
          %1006 = sbr.rel (%p1004) target = $region48
        $region47: #{tpu_custom_call.1} parent=27 // pred_region
          %1008 = dma.done [#allocation5], 16
        $region48: #{tpu_custom_call.1} parent=27 // pred_fallthru
          _
      $region28: #{tpu_custom_call.1} parent=5 // pred_fallthru
        _
      %p1009 = scmp.le.s32.totalorder 2, %s12
      // Predicated region
      $region49: #{tpu_custom_call.1} parent=5 // pred_check
        %p1010 = pneg %p1009
      $region50: #{tpu_custom_call.1} parent=5 // pred_check_branch
        %1012 = sbr.rel (%p1010) target = $region52
      $region51: #{tpu_custom_call.1} parent=5 // pred_region
        %s1013 = ssub.s32 %s12, 2
      $region52: #{tpu_custom_call.1} parent=5 // pred_fallthru
        _
    $region6: #{tpu_custom_call.1} parent=1 // loop_footer
      %s16 = sadd.s32 1, %s12
    $region7: #{tpu_custom_call.1} parent=1 // loop_footer_branch
      %11 = sbr.rel target = $region3
    $region8: #{tpu_custom_call.1} parent=1 // loop_exit
      _
    %1014 = vsyncpa [#allocation3], 1
    %s1015 = scalar_lea.sflag [#allocation3], 1
    %1016 = vsyncpa %s1015, 1
    %1017 = vsyncpa [#allocation5], 1

</llo_original>
